<compile_context>
chip_gen: v6e
topology: v6e:2x2x1
jax: 0.10.0
libtpu: 0.0.40
codegen_flags: <defaults>
</compile_context>

<pallas_src>
import functools

import jax
import jax.numpy as jnp
from jax import lax
from jax.experimental import pallas as pl
from jax.experimental.pallas import tpu as pltpu


def _sdpa_kernel(q_ref, k_ref, v_ref, out_ref, attn_ref, log_attn_ref, *, inv_temperature):
    # Each grid step handles one (batch, q-tile): refs are (1, TQ, D) / (1, Lk, D) / ...
    # Fold 1/temperature into q (TQ*D cheap multiplies) instead of dividing the
    # full (TQ, Lk) scores tile.
    q = q_ref[0] * jnp.asarray(inv_temperature, dtype=q_ref.dtype)  # (TQ, D)
    k = k_ref[0]                                                    # (Lk, D)
    v = v_ref[0]                                                    # (Lk, Dv)

    # scores = (q / T) @ k^T  -> (TQ, Lk); contract on dim 1 of both operands so the
    # MXU is fed directly in bqd,bkd->bqk form (no materialized k transpose).
    scores = lax.dot_general(
        q, k,
        dimension_numbers=(((1,), (1,)), ((), ())),
        preferred_element_type=jnp.float32,
    )

    # numerically stable softmax / log_softmax along the key axis (torch dim=2)
    m = jnp.max(scores, axis=-1, keepdims=True)
    shifted = scores - m
    e = jnp.exp(shifted)
    denom = jnp.sum(e, axis=-1, keepdims=True)          # (TQ, 1)
    inv_denom = 1.0 / denom                              # exact; only TQ divides
    attn = e * inv_denom                                 # broadcast multiply, not divide
    log_attn = shifted - jnp.log(denom)

    # TODO(synk): nn.Dropout(attn_dropout) is identity in eval/inference mode; training-time
    #             stochastic dropout of the attention weights is not applied here.

    out = lax.dot_general(
        attn.astype(v.dtype), v,
        dimension_numbers=(((1,), (0,)), ((), ())),
        preferred_element_type=jnp.float32,
    )

    out_ref[0] = out.astype(out_ref.dtype)
    attn_ref[0] = attn.astype(attn_ref.dtype)
    log_attn_ref[0] = log_attn.astype(log_attn_ref.dtype)


def _vmem_estimate_bytes(tq, Lk, D, Dv, in_itemsize, out_itemsize):
    """Rough double-buffered VMEM footprint of one grid step (inputs + outputs)."""
    q_t = tq * D * in_itemsize
    k_t = Lk * D * in_itemsize
    v_t = Lk * Dv * in_itemsize
    o_t = tq * Dv * out_itemsize
    attn_t = tq * Lk * 4      # f32 attn output tile
    lattn_t = tq * Lk * 4     # f32 log_attn output tile
    return 2 * (q_t + k_t + v_t + o_t + attn_t + lattn_t)


def _choose_tq(Lq, Lk, D, Dv, in_itemsize, out_itemsize):
    """Largest q-tile (multiple of 8, dividing Lq) whose pipelined footprint fits VMEM.

    Budget of ~40 MiB keeps headroom below v7x's 64 MiB physical VMEM while still
    allowing 256-1024 wide tiles on v5e/v6e (128 MiB physical) for long Lk.
    """
    candidates = [t for t in (1024, 512, 256, 128, 64, 32, 16, 8)
                  if t <= Lq and Lq % t == 0]
    if not candidates:
        # Lq too small / not a multiple of 8: single tile spanning the full dim
        # (block_shape == full array dim satisfies the (8,128) constraint).
        return Lq
    budget = 40 * 1024 * 1024
    for tq in candidates:
        if _vmem_estimate_bytes(tq, Lk, D, Dv, in_itemsize, out_itemsize) <= budget:
            return tq
    return candidates[-1]


def scaled_dot_product_attention(q, k, v, temperature):
    """q: (B, Lq, D), k: (B, Lk, D), v: (B, Lk, Dv)  ->  (output, attn, log_attn)."""
    B, Lq, D = q.shape
    _, Lk, Dk = k.shape
    _, _, Dv = v.shape
    assert D == Dk and k.shape[0] == B and v.shape[0] == B and v.shape[1] == Lk

    out_dtype = q.dtype
    attn_dtype = jnp.float32   # keep f32: attn/log_attn compared at 1e-5 tolerance

    in_itemsize = jnp.dtype(q.dtype).itemsize
    out_itemsize = jnp.dtype(out_dtype).itemsize
    TQ = _choose_tq(Lq, Lk, D, Dv, in_itemsize, out_itemsize)
    n_q_tiles = Lq // TQ

    # Raise the scoped VMEM limit enough for the chosen tiles, but stay well under
    # v7x's 64 MiB physical VMEM so a single limit works on all generations.
    est = _vmem_estimate_bytes(TQ, Lk, D, Dv, in_itemsize, out_itemsize)
    vmem_limit = int(min(max(32 * 1024 * 1024, est + 8 * 1024 * 1024), 48 * 1024 * 1024))

    kernel = functools.partial(_sdpa_kernel, inv_temperature=1.0 / float(temperature))

    out_shapes = (
        jax.ShapeDtypeStruct((B, Lq, Dv), out_dtype),      # output
        jax.ShapeDtypeStruct((B, Lq, Lk), attn_dtype),     # attn (softmax)
        jax.ShapeDtypeStruct((B, Lq, Lk), attn_dtype),     # log_attn (log_softmax)
    )

    grid_spec = pltpu.PrefetchScalarGridSpec(
        num_scalar_prefetch=0,
        grid=(B, n_q_tiles),
        in_specs=[
            pl.BlockSpec((1, TQ, D), lambda b, i: (b, i, 0)),
            # k/v index_map ignores the q-tile index -> block stays VMEM-resident
            # (no re-DMA) while we sweep over q-tiles of the same batch element.
            pl.BlockSpec((1, Lk, D), lambda b, i: (b, 0, 0)),
            pl.BlockSpec((1, Lk, Dv), lambda b, i: (b, 0, 0)),
        ],
        out_specs=[
            pl.BlockSpec((1, TQ, Dv), lambda b, i: (b, i, 0)),
            pl.BlockSpec((1, TQ, Lk), lambda b, i: (b, i, 0)),
            pl.BlockSpec((1, TQ, Lk), lambda b, i: (b, i, 0)),
        ],
    )

    return pl.pallas_call(
        kernel,
        out_shape=out_shapes,
        grid_spec=grid_spec,
        compiler_params=pltpu.CompilerParams(
            # Every (b, q-tile) writes a disjoint output tile -> both axes parallel
            # (lets the grid shard across the 2 TensorCores on v7x).
            dimension_semantics=("parallel", "parallel"),
            vmem_limit_bytes=vmem_limit,
        ),
    )(q, k, v)


def _reference(q, k, v, temperature):
    attn = jnp.einsum("bqd,bkd->bqk", q, k) / temperature
    attn = attn.astype(jnp.float32)
    log_attn = jax.nn.log_softmax(attn, axis=2)
    attn_sm = jax.nn.softmax(attn, axis=2)
    out = jnp.einsum("bqk,bkd->bqd", attn_sm, v)
    return out, attn_sm, log_attn


if __name__ == "__main__":
    key = jax.random.PRNGKey(0)
    kq, kk, kv = jax.random.split(key, 3)

    B, Lq, Lk, D, Dv = 2, 8, 8, 32, 32
    temperature = float(D) ** 0.5  # typical value: sqrt(d_k)

    q = jax.random.normal(kq, (B, Lq, D), dtype=jnp.float32)
    k = jax.random.normal(kk, (B, Lk, D), dtype=jnp.float32)
    v = jax.random.normal(kv, (B, Lk, Dv), dtype=jnp.float32)

    out, attn, log_attn = scaled_dot_product_attention(q, k, v, temperature)
    jax.block_until_ready((out, attn, log_attn))

    ref_out, ref_attn, ref_log_attn = _reference(q, k, v, temperature)
    assert jnp.allclose(out, ref_out, atol=1e-5, rtol=1e-5)
    assert jnp.allclose(attn, ref_attn, atol=1e-5, rtol=1e-5)
    assert jnp.allclose(log_attn, ref_log_attn, atol=1e-5, rtol=1e-5)

    print("KERNEL_OK")
</pallas_src>

<mosaic_0001>
module attributes {stable_mosaic.version = 11 : i64} {
  func.func @_sdpa_kernel(%arg0: i32, %arg1: i32, %arg2: memref<1x8x32xf32, #tpu.memory_space<vmem>>, %arg3: memref<1x8x32xf32, #tpu.memory_space<vmem>>, %arg4: memref<1x8x32xf32, #tpu.memory_space<vmem>>, %arg5: memref<1x8x32xf32, #tpu.memory_space<vmem>>, %arg6: memref<1x8x8xf32, #tpu.memory_space<vmem>>, %arg7: memref<1x8x8xf32, #tpu.memory_space<vmem>>) attributes {dimension_semantics = [#tpu.dimension_semantics<parallel>, #tpu.dimension_semantics<parallel>], iteration_bounds = array<i64: 2, 1>, scalar_prefetch = 0 : i64, scratch_operands = 0 : i64, tpu.core_type = #tpu.core_type<tc>, window_params = [{transform_indices = @transform_0, window_bounds = array<i64: 1, 8, 32>}, {transform_indices = @transform_1, window_bounds = array<i64: 1, 8, 32>}, {transform_indices = @transform_2, window_bounds = array<i64: 1, 8, 32>}, {transform_indices = @transform_3, window_bounds = array<i64: 1, 8, 32>}, {transform_indices = @transform_4, window_bounds = array<i64: 1, 8, 8>}, {transform_indices = @transform_5, window_bounds = array<i64: 1, 8, 8>}]} {
    %c0 = arith.constant 0 : index
    %c0_0 = arith.constant 0 : index
    %c0_1 = arith.constant 0 : index
    %0 = vector.load %arg2[%c0, %c0_0, %c0_1] : memref<1x8x32xf32, #tpu.memory_space<vmem>>, vector<1x8x32xf32>
    %1 = vector.shape_cast %0 : vector<1x8x32xf32> to vector<8x32xf32>
    %cst = arith.constant 0.176776692 : f32
    %2 = vector.broadcast %cst : f32 to vector<8x32xf32>
    %3 = arith.mulf %1, %2 : vector<8x32xf32>
    %c0_2 = arith.constant 0 : index
    %c0_3 = arith.constant 0 : index
    %c0_4 = arith.constant 0 : index
    %4 = vector.load %arg3[%c0_2, %c0_3, %c0_4] : memref<1x8x32xf32, #tpu.memory_space<vmem>>, vector<1x8x32xf32>
    %5 = vector.shape_cast %4 : vector<1x8x32xf32> to vector<8x32xf32>
    %c0_5 = arith.constant 0 : index
    %c0_6 = arith.constant 0 : index
    %c0_7 = arith.constant 0 : index
    %6 = vector.load %arg4[%c0_5, %c0_6, %c0_7] : memref<1x8x32xf32, #tpu.memory_space<vmem>>, vector<1x8x32xf32>
    %7 = vector.shape_cast %6 : vector<1x8x32xf32> to vector<8x32xf32>
    %cst_8 = arith.constant dense<0.000000e+00> : vector<8x8xf32>
    %8 = tpu.matmul %3, %5, %cst_8 {dimension_numbers = #tpu.dot_dimension_numbers<[1], [1], [0], [0], [0, 0, 1, 0], [], []>} : vector<8x32xf32>, vector<8x32xf32>, vector<8x8xf32> -> vector<8x8xf32>
    %cst_9 = arith.constant dense<0xFF800000> : vector<8xf32>
    %9 = vector.multi_reduction <maximumf>, %8, %cst_9 [1] : vector<8x8xf32> to vector<8xf32>
    %10 = vector.shape_cast %9 : vector<8xf32> to vector<8x1xf32>
    %11 = vector.broadcast %10 : vector<8x1xf32> to vector<8x8xf32>
    %12 = arith.subf %8, %11 : vector<8x8xf32>
    %13 = math.exp %12 : vector<8x8xf32>
    %cst_10 = arith.constant dense<0.000000e+00> : vector<8xf32>
    %14 = vector.multi_reduction <add>, %13, %cst_10 [1] : vector<8x8xf32> to vector<8xf32>
    %15 = vector.shape_cast %14 : vector<8xf32> to vector<8x1xf32>
    %cst_11 = arith.constant 1.000000e+00 : f32
    %16 = vector.broadcast %cst_11 : f32 to vector<8x1xf32>
    %17 = arith.divf %16, %15 : vector<8x1xf32>
    %18 = vector.broadcast %17 : vector<8x1xf32> to vector<8x8xf32>
    %19 = arith.mulf %13, %18 : vector<8x8xf32>
    %20 = math.log %15 : vector<8x1xf32>
    %21 = vector.broadcast %20 : vector<8x1xf32> to vector<8x8xf32>
    %22 = arith.subf %12, %21 : vector<8x8xf32>
    %cst_12 = arith.constant dense<0.000000e+00> : vector<8x32xf32>
    %23 = tpu.matmul %19, %7, %cst_12 {dimension_numbers = #tpu.dot_dimension_numbers<[1], [0], [0], [1], [0, 0, 1, 1], [], []>} : vector<8x8xf32>, vector<8x32xf32>, vector<8x32xf32> -> vector<8x32xf32>
    %c0_13 = arith.constant 0 : index
    %c0_14 = arith.constant 0 : index
    %c0_15 = arith.constant 0 : index
    %24 = vector.load %arg5[%c0_13, %c0_14, %c0_15] : memref<1x8x32xf32, #tpu.memory_space<vmem>>, vector<1x8x32xf32>
    %25 = vector.shape_cast %24 : vector<1x8x32xf32> to vector<8x32xf32>
    %26 = vector.shape_cast %23 : vector<8x32xf32> to vector<1x8x32xf32>
    tpu.vector_store %arg5[%c0_13, %c0_14, %c0_15], %26 {strides = array<i32>} : memref<1x8x32xf32, #tpu.memory_space<vmem>>, vector<1x8x32xf32>,
    %c0_16 = arith.constant 0 : index
    %c0_17 = arith.constant 0 : index
    %c0_18 = arith.constant 0 : index
    %27 = vector.load %arg6[%c0_16, %c0_17, %c0_18] : memref<1x8x8xf32, #tpu.memory_space<vmem>>, vector<1x8x8xf32>
    %28 = vector.shape_cast %27 : vector<1x8x8xf32> to vector<8x8xf32>
    %29 = vector.shape_cast %19 : vector<8x8xf32> to vector<1x8x8xf32>
    tpu.vector_store %arg6[%c0_16, %c0_17, %c0_18], %29 {strides = array<i32>} : memref<1x8x8xf32, #tpu.memory_space<vmem>>, vector<1x8x8xf32>,
    %c0_19 = arith.constant 0 : index
    %c0_20 = arith.constant 0 : index
    %c0_21 = arith.constant 0 : index
    %30 = vector.load %arg7[%c0_19, %c0_20, %c0_21] : memref<1x8x8xf32, #tpu.memory_space<vmem>>, vector<1x8x8xf32>
    %31 = vector.shape_cast %30 : vector<1x8x8xf32> to vector<8x8xf32>
    %32 = vector.shape_cast %22 : vector<8x8xf32> to vector<1x8x8xf32>
    tpu.vector_store %arg7[%c0_19, %c0_20, %c0_21], %32 {strides = array<i32>} : memref<1x8x8xf32, #tpu.memory_space<vmem>>, vector<1x8x8xf32>,
    return
  }
  func.func @transform_0(%arg0: i32, %arg1: i32) -> (i32, i32, i32) {
    %c0_i32 = arith.constant 0 : i32
    %c0_i32_0 = arith.constant 0 : i32
    return %arg0, %arg1, %c0_i32 : i32, i32, i32
  }
  func.func @transform_1(%arg0: i32, %arg1: i32) -> (i32, i32, i32) {
    %c0_i32 = arith.constant 0 : i32
    %c0_i32_0 = arith.constant 0 : i32
    %c0_i32_1 = arith.constant 0 : i32
    return %arg0, %c0_i32, %c0_i32_0 : i32, i32, i32
  }
  func.func @transform_2(%arg0: i32, %arg1: i32) -> (i32, i32, i32) {
    %c0_i32 = arith.constant 0 : i32
    %c0_i32_0 = arith.constant 0 : i32
    %c0_i32_1 = arith.constant 0 : i32
    return %arg0, %c0_i32, %c0_i32_0 : i32, i32, i32
  }
  func.func @transform_3(%arg0: i32, %arg1: i32) -> (i32, i32, i32) {
    %c0_i32 = arith.constant 0 : i32
    %c0_i32_0 = arith.constant 0 : i32
    return %arg0, %arg1, %c0_i32 : i32, i32, i32
  }
  func.func @transform_4(%arg0: i32, %arg1: i32) -> (i32, i32, i32) {
    %c0_i32 = arith.constant 0 : i32
    %c0_i32_0 = arith.constant 0 : i32
    return %arg0, %arg1, %c0_i32 : i32, i32, i32
  }
  func.func @transform_5(%arg0: i32, %arg1: i32) -> (i32, i32, i32) {
    %c0_i32 = arith.constant 0 : i32
    %c0_i32_0 = arith.constant 0 : i32
    return %arg0, %arg1, %c0_i32 : i32, i32, i32
  }
}

</mosaic_0001>

<llo_original>
// kernel: tpu_custom_call.1
$region0: #{tpu_custom_call.1}
  #allocation0 [shape = 'u32[]', space=smem, size = 0x4, offset = 0x4, fixed_abs, tag = 'smem constant byte address 0x4 - core index']
  #allocation1 [shape = 'u32[144,128]{1,0:T(1,128)}', space=vmem, size = 0x12000, scoped, tag = 'internal scratch']
  %s0 = inlined_call_operand.hbm [shape: f32[2,8,32], index: 0, kind: input, shape index: {}]
  %s1 = inlined_call_operand.hbm [shape: f32[2,8,32], index: 1, kind: input, shape index: {}]
  %s2 = inlined_call_operand.hbm [shape: f32[2,8,32], index: 2, kind: input, shape index: {}]
  %s3 = inlined_call_operand.hbm [shape: f32[2,8,32], index: 3, kind: output, shape index: {0}]
  %s4 = inlined_call_operand.hbm [shape: f32[2,8,8], index: 4, kind: output, shape index: {1}]
  %s5 = inlined_call_operand.hbm [shape: f32[2,8,8], index: 5, kind: output, shape index: {2}]
  %6 = xla_tuple %s3, %s4, %s5
  %s7 = sld [smem:[#allocation0]]
  $region73: #{tpu_custom_call.1} parent=0
    _
  %s9 = ssub.s32 1, %s7
  %s10 = scalar_select 0, %s9, %s7
  $region1: #{tpu_custom_call.1} parent=0
    #allocation2 [shape = 'u8[8192]{0}', space=vmem, size = 0x2000, scoped, tag = 'input window, operand 0']
    #allocation3 [shape = 's32[2]{0}', space=sflag, size = 0x8, scoped, tag = 'scoped memory for tpu_custom_call.1']
    #allocation4 [shape = 's32[2]{0}', space=sflag, size = 0x8, scoped, tag = 'scoped memory for tpu_custom_call.1']
    #allocation5 [shape = 'u8[8192]{0}', space=vmem, size = 0x2000, scoped, tag = 'input window, operand 1']
    #allocation6 [shape = 's32[2]{0}', space=sflag, size = 0x8, scoped, tag = 'scoped memory for tpu_custom_call.1']
    #allocation7 [shape = 'u8[8192]{0}', space=vmem, size = 0x2000, scoped, tag = 'input window, operand 2']
    #allocation8 [shape = 'u8[8192]{0}', space=vmem, size = 0x2000, scoped, tag = 'output window, operand 0']
    #allocation9 [shape = 'u8[8192]{0}', space=vmem, size = 0x2000, scoped, tag = 'output window, operand 1']
    #allocation10 [shape = 's32[2]{0}', space=sflag, size = 0x8, scoped, tag = 'scoped memory for tpu_custom_call.1']
    #allocation11 [shape = 'u8[8192]{0}', space=vmem, size = 0x2000, scoped, tag = 'output window, operand 2']
    %11 = vsyncpa [#allocation3], 0
    %s12 = scalar_lea.sflag [#allocation3], 1
    %13 = vsyncpa %s12, 0
    %14 = vsyncpa [#allocation6], 0
    %s15 = scalar_lea.sflag [#allocation6], 1
    %16 = vsyncpa %s15, 0
    %17 = vsyncpa [#allocation4], 0
    %s18 = scalar_lea.sflag [#allocation4], 1
    %19 = vsyncpa %s18, 0
    %20 = vsyncpa [#allocation10], 0
    %s21 = scalar_lea.sflag [#allocation10], 1
    %22 = vsyncpa %s21, 0
    loop: start=0, step=1, limit=4
    $region2: #{tpu_custom_call.1} parent=1 // loop_pre_header
      _
    $region3: #{tpu_custom_call.1} parent=1 // loop_header
      %s24 = sphi 0, %s28
      %p25 = scmp.ge.s32.totalorder %s24, 4
      %s31 = sphi 0, %s43
      %s32 = sphi 0, %s39
      %s33 = sphi 0, %s31
      %s34 = sphi 0, %s32
      %s35 = sphi 0, %s33
      %s36 = sphi 0, %s34
      %s48 = sphi 0, %s50
      %s51 = sphi 0, %s48
      %s52 = sphi 0, %s51
      %s68 = sphi 0, %s52
      %s74 = sphi 0, %s76
      %s77 = sphi 0, %s74
      %s78 = sphi 0, %s77
      %s94 = sphi 0, %s78
      %s100 = sphi 0, %s102
      %s103 = sphi 0, %s100
      %s104 = sphi 0, %s103
      %s120 = sphi 0, %s104
      %s128 = sphi 0, %s130
      %s131 = sphi 0, %s128
      %s132 = sphi 0, %s131
      %s148 = sphi 0, %s132
      %s156 = sphi 0, %s158
      %s159 = sphi 0, %s156
      %s160 = sphi 0, %s159
      %s176 = sphi 0, %s160
      %s184 = sphi 0, %s186
      %s187 = sphi 0, %s184
      %s188 = sphi 0, %s187
      %s204 = sphi 0, %s188
    $region4: #{tpu_custom_call.1} parent=1 // loop_header_branch
      %27 = sbr.rel (%p25) target = $region8
    $region5: #{tpu_custom_call.1} parent=1 // loop_body
      %s29 = ssub.s32 %s24, 1
      %s30 = ssub.s32 %s24, 2
      %s37 = sadd.s32 1, %s32
      %p38 = scmp.ge.s32.totalorder %s37, 1
      %s39 = scalar_select %p38, 0, %s37
      %s40 = sadd.s32 1, %s31
      %s41 = scalar_select %p38, %s40, %s31
      %p42 = scmp.ge.s32.totalorder %s41, 2
      %s43 = scalar_select %p42, 0, %s41
      %s44 = ssub.s32 %s31, %s43
      %s45 = ssub.s32 %s32, %s39
      %s46 = sor.u32 %s44, %s45
      %p47 = scmp.eq.s32.totalorder %s46, 0
      %s49 = sadd.s32 %s48, 1
      %s50 = scalar_select %p47, %s48, %s49
      %p53 = pneg %p47
      %p54 = scmp.eq.s32.totalorder %s24, 1
      %p55 = por %p53, %p54
      %p56 = scmp.ne.s32.totalorder %s48, %s51
      %p57 = scmp.eq.s32.totalorder %s24, 0
      %p58 = por %p56, %p57
      %p59 = scmp.ne.s32.totalorder %s48, %s51
      %p60 = scmp.eq.s32.totalorder %s29, 1
      %p61 = por %p59, %p60
      %p62 = scmp.ne.s32.totalorder %s51, %s52
      %p63 = scmp.eq.s32.totalorder %s29, 0
      %p64 = por %p62, %p63
      %p65 = scmp.ne.s32.totalorder %s51, %s52
      %p66 = scmp.eq.s32.totalorder %s30, 1
      %p67 = por %p65, %p66
      %p69 = scmp.ne.s32.totalorder %s52, %s68
      %p70 = scmp.eq.s32.totalorder %s30, 0
      %p71 = por %p69, %p70
      %s72 = ssub.s32 %s31, %s43
      %p73 = scmp.eq.s32.totalorder %s72, 0
      %s75 = sadd.s32 %s74, 1
      %s76 = scalar_select %p73, %s74, %s75
      %p79 = pneg %p73
      %p80 = scmp.eq.s32.totalorder %s24, 1
      %p81 = por %p79, %p80
      %p82 = scmp.ne.s32.totalorder %s74, %s77
      %p83 = scmp.eq.s32.totalorder %s24, 0
      %p84 = por %p82, %p83
      %p85 = scmp.ne.s32.totalorder %s74, %s77
      %p86 = scmp.eq.s32.totalorder %s29, 1
      %p87 = por %p85, %p86
      %p88 = scmp.ne.s32.totalorder %s77, %s78
      %p89 = scmp.eq.s32.totalorder %s29, 0
      %p90 = por %p88, %p89
      %p91 = scmp.ne.s32.totalorder %s77, %s78
      %p92 = scmp.eq.s32.totalorder %s30, 1
      %p93 = por %p91, %p92
      %p95 = scmp.ne.s32.totalorder %s78, %s94
      %p96 = scmp.eq.s32.totalorder %s30, 0
      %p97 = por %p95, %p96
      %s98 = ssub.s32 %s31, %s43
      %p99 = scmp.eq.s32.totalorder %s98, 0
      %s101 = sadd.s32 %s100, 1
      %s102 = scalar_select %p99, %s100, %s101
      %p105 = pneg %p99
      %p106 = scmp.eq.s32.totalorder %s24, 1
      %p107 = por %p105, %p106
      %p108 = scmp.ne.s32.totalorder %s100, %s103
      %p109 = scmp.eq.s32.totalorder %s24, 0
      %p110 = por %p108, %p109
      %p111 = scmp.ne.s32.totalorder %s100, %s103
      %p112 = scmp.eq.s32.totalorder %s29, 1
      %p113 = por %p111, %p112
      %p114 = scmp.ne.s32.totalorder %s103, %s104
      %p115 = scmp.eq.s32.totalorder %s29, 0
      %p116 = por %p114, %p115
      %p117 = scmp.ne.s32.totalorder %s103, %s104
      %p118 = scmp.eq.s32.totalorder %s30, 1
      %p119 = por %p117, %p118
      %p121 = scmp.ne.s32.totalorder %s104, %s120
      %p122 = scmp.eq.s32.totalorder %s30, 0
      %p123 = por %p121, %p122
      %s124 = ssub.s32 %s31, %s43
      %s125 = ssub.s32 %s32, %s39
      %s126 = sor.u32 %s124, %s125
      %p127 = scmp.eq.s32.totalorder %s126, 0
      %s129 = sadd.s32 %s128, 1
      %s130 = scalar_select %p127, %s128, %s129
      %p133 = pneg %p127
      %p134 = scmp.eq.s32.totalorder %s24, 1
      %p135 = por %p133, %p134
      %p136 = scmp.ne.s32.totalorder %s128, %s131
      %p137 = scmp.eq.s32.totalorder %s24, 0
      %p138 = por %p136, %p137
      %p139 = scmp.ne.s32.totalorder %s128, %s131
      %p140 = scmp.eq.s32.totalorder %s29, 1
      %p141 = por %p139, %p140
      %p142 = scmp.ne.s32.totalorder %s131, %s132
      %p143 = scmp.eq.s32.totalorder %s29, 0
      %p144 = por %p142, %p143
      %p145 = scmp.ne.s32.totalorder %s131, %s132
      %p146 = scmp.eq.s32.totalorder %s30, 1
      %p147 = por %p145, %p146
      %p149 = scmp.ne.s32.totalorder %s132, %s148
      %p150 = scmp.eq.s32.totalorder %s30, 0
      %p151 = por %p149, %p150
      %s152 = ssub.s32 %s31, %s43
      %s153 = ssub.s32 %s32, %s39
      %s154 = sor.u32 %s152, %s153
      %p155 = scmp.eq.s32.totalorder %s154, 0
      %s157 = sadd.s32 %s156, 1
      %s158 = scalar_select %p155, %s156, %s157
      %p161 = pneg %p155
      %p162 = scmp.eq.s32.totalorder %s24, 1
      %p163 = por %p161, %p162
      %p164 = scmp.ne.s32.totalorder %s156, %s159
      %p165 = scmp.eq.s32.totalorder %s24, 0
      %p166 = por %p164, %p165
      %p167 = scmp.ne.s32.totalorder %s156, %s159
      %p168 = scmp.eq.s32.totalorder %s29, 1
      %p169 = por %p167, %p168
      %p170 = scmp.ne.s32.totalorder %s159, %s160
      %p171 = scmp.eq.s32.totalorder %s29, 0
      %p172 = por %p170, %p171
      %p173 = scmp.ne.s32.totalorder %s159, %s160
      %p174 = scmp.eq.s32.totalorder %s30, 1
      %p175 = por %p173, %p174
      %p177 = scmp.ne.s32.totalorder %s160, %s176
      %p178 = scmp.eq.s32.totalorder %s30, 0
      %p179 = por %p177, %p178
      %s180 = ssub.s32 %s31, %s43
      %s181 = ssub.s32 %s32, %s39
      %s182 = sor.u32 %s180, %s181
      %p183 = scmp.eq.s32.totalorder %s182, 0
      %s185 = sadd.s32 %s184, 1
      %s186 = scalar_select %p183, %s184, %s185
      %p189 = pneg %p183
      %p190 = scmp.eq.s32.totalorder %s24, 1
      %p191 = por %p189, %p190
      %p192 = scmp.ne.s32.totalorder %s184, %s187
      %p193 = scmp.eq.s32.totalorder %s24, 0
      %p194 = por %p192, %p193
      %p195 = scmp.ne.s32.totalorder %s184, %s187
      %p196 = scmp.eq.s32.totalorder %s29, 1
      %p197 = por %p195, %p196
      %p198 = scmp.ne.s32.totalorder %s187, %s188
      %p199 = scmp.eq.s32.totalorder %s29, 0
      %p200 = por %p198, %p199
      %p201 = scmp.ne.s32.totalorder %s187, %s188
      %p202 = scmp.eq.s32.totalorder %s30, 1
      %p203 = por %p201, %p202
      %p205 = scmp.ne.s32.totalorder %s188, %s204
      %p206 = scmp.eq.s32.totalorder %s30, 0
      %p207 = por %p205, %p206
      %p208 = scmp.le.s32.totalorder 1, %s24
      %p209 = scmp.lt.s32.totalorder %s24, 3
      %p210 = pnand %p208, %p209
      %p211 = pneg %p210
      // Predicated region
      $region9: #{tpu_custom_call.1} parent=5 // pred_check
        _
      $region10: #{tpu_custom_call.1} parent=5 // pred_check_branch
        %213 = sbr.rel (%p210) target = $region12
      $region11: #{tpu_custom_call.1} parent=5 // pred_region
        %s214 = ssub.s32 %s24, 1
      $region12: #{tpu_custom_call.1} parent=5 // pred_fallthru
        _
      %p215 = scmp.lt.s32.totalorder %s24, 2
      // Predicated region
      $region13: #{tpu_custom_call.1} parent=5 // pred_check
        %p216 = pneg %p215
      $region14: #{tpu_custom_call.1} parent=5 // pred_check_branch
        %218 = sbr.rel (%p216) target = $region16
      $region15: #{tpu_custom_call.1} parent=5 // pred_region
        // Predicated region
        $region17: #{tpu_custom_call.1} parent=15 // pred_check
          %p219 = pneg %p58
        $region18: #{tpu_custom_call.1} parent=15 // pred_check_branch
          %221 = sbr.rel (%p219) target = $region20
        $region19: #{tpu_custom_call.1} parent=15 // pred_region
          %s222 = sand.u32 %s48, 1
          %s223 = scalar_lea.sflag [#allocation3], %s222
          %s224 = sand.u32 %s48, 1
          %s225 = smul.addr %s224, 8
          %s226 = scalar_lea.vmem [#allocation2], %s225
          %s228 = ssub.s32 128, 128
          %229 = vsyncadd %s223, %s228
          %s230 = sadd.s32 %s32, %s31
          %s231 = smul.addr %s230, 128
          %s232 = scalar_lea.hbm %s0, %s231
          %s234 = sshll.u32 %s226, 4
          %s235 = int_to_ptr.vmem [resolvable:$true] %s234
          %237 = dma.hbm_to_vmem [thread:$0]  %s232, 128, %s235, %s223
        $region20: #{tpu_custom_call.1} parent=15 // pred_fallthru
          _
        // Predicated region
        $region21: #{tpu_custom_call.1} parent=15 // pred_check
          %p238 = pneg %p84
        $region22: #{tpu_custom_call.1} parent=15 // pred_check_branch
          %240 = sbr.rel (%p238) target = $region24
        $region23: #{tpu_custom_call.1} parent=15 // pred_region
          %s241 = sand.u32 %s24, 1
          %s242 = scalar_lea.sflag [#allocation6], %s241
          %s243 = sand.u32 %s74, 1
          %s244 = smul.addr %s243, 8
          %s245 = scalar_lea.vmem [#allocation5], %s244
          %s247 = ssub.s32 128, 128
          %248 = vsyncadd %s242, %s247
          %s249 = smul.addr %s31, 128
          %s250 = scalar_lea.hbm %s1, %s249
          %s252 = sshll.u32 %s245, 4
          %s253 = int_to_ptr.vmem [resolvable:$true] %s252
          %255 = dma.hbm_to_vmem [thread:$0]  %s250, 128, %s253, %s242
        $region24: #{tpu_custom_call.1} parent=15 // pred_fallthru
          _
        // Predicated region
        $region25: #{tpu_custom_call.1} parent=15 // pred_check
          %p256 = pneg %p110
        $region26: #{tpu_custom_call.1} parent=15 // pred_check_branch
          %258 = sbr.rel (%p256) target = $region28
        $region27: #{tpu_custom_call.1} parent=15 // pred_region
          %s259 = sand.u32 %s24, 1
          %s260 = scalar_lea.sflag [#allocation6], %s259
          %s261 = sand.u32 %s100, 1
          %s262 = smul.addr %s261, 8
          %s263 = scalar_lea.vmem [#allocation7], %s262
          %s265 = ssub.s32 128, 128
          %266 = vsyncadd %s260, %s265
          %s267 = smul.addr %s31, 128
          %s268 = scalar_lea.hbm %s2, %s267
          %s270 = sshll.u32 %s263, 4
          %s271 = int_to_ptr.vmem [resolvable:$true] %s270
          %273 = dma.hbm_to_vmem [thread:$0]  %s268, 128, %s271, %s260
        $region28: #{tpu_custom_call.1} parent=15 // pred_fallthru
          _
      $region16: #{tpu_custom_call.1} parent=5 // pred_fallthru
        _
      %p274 = scmp.le.s32.totalorder 1, %s24
      %p275 = scmp.lt.s32.totalorder %s24, 3
      %p276 = pnand %p274, %p275
      %p277 = pneg %p276
      // Predicated region
      $region29: #{tpu_custom_call.1} parent=5 // pred_check
        _
      $region30: #{tpu_custom_call.1} parent=5 // pred_check_branch
        %279 = sbr.rel (%p276) target = $region32
      $region31: #{tpu_custom_call.1} parent=5 // pred_region
        %s280 = ssub.s32 %s24, 1
        %s281 = sand.u32 %s51, 1
        %s282 = scalar_lea.sflag [#allocation3], %s281
        %s283 = sand.u32 %s51, 1
        %s284 = smul.addr %s283, 8
        %s285 = scalar_lea.vmem [#allocation2], %s284
        // Predicated region
        $region33: #{tpu_custom_call.1} parent=31 // pred_check
          %p286 = pneg %p64
        $region34: #{tpu_custom_call.1} parent=31 // pred_check_branch
          %288 = sbr.rel (%p286) target = $region36
        $region35: #{tpu_custom_call.1} parent=31 // pred_region
          %289 = dma.done %s282, 128
        $region36: #{tpu_custom_call.1} parent=31 // pred_fallthru
          _
        %s290 = sand.u32 %s29, 1
        %s291 = scalar_lea.sflag [#allocation6], %s290
        %s292 = sand.u32 %s77, 1
        %s293 = smul.addr %s292, 8
        %s294 = scalar_lea.vmem [#allocation5], %s293
        // Predicated region
        $region37: #{tpu_custom_call.1} parent=31 // pred_check
          %p295 = pneg %p90
        $region38: #{tpu_custom_call.1} parent=31 // pred_check_branch
          %297 = sbr.rel (%p295) target = $region40
        $region39: #{tpu_custom_call.1} parent=31 // pred_region
          %298 = dma.done %s291, 128
        $region40: #{tpu_custom_call.1} parent=31 // pred_fallthru
          _
        %s299 = sand.u32 %s29, 1
        %s300 = scalar_lea.sflag [#allocation6], %s299
        %s301 = sand.u32 %s103, 1
        %s302 = smul.addr %s301, 8
        %s303 = scalar_lea.vmem [#allocation7], %s302
        // Predicated region
        $region41: #{tpu_custom_call.1} parent=31 // pred_check
          %p304 = pneg %p116
        $region42: #{tpu_custom_call.1} parent=31 // pred_check_branch
          %306 = sbr.rel (%p304) target = $region44
        $region43: #{tpu_custom_call.1} parent=31 // pred_region
          %307 = dma.done %s300, 128
        $region44: #{tpu_custom_call.1} parent=31 // pred_fallthru
          _
        %s308 = sand.u32 %s51, 1
        %s309 = scalar_lea.sflag [#allocation3], %s308
        %s310 = sand.u32 %s51, 1
        %s311 = smul.addr %s310, 8
        %s312 = scalar_lea.vmem [#allocation2], %s311
        %p313 = pneg %p64
        %p314 = pneg %p61
        %s315 = sand.u32 %s29, 1
        %s316 = scalar_lea.sflag [#allocation6], %s315
        %s317 = sand.u32 %s77, 1
        %s318 = smul.addr %s317, 8
        %s319 = scalar_lea.vmem [#allocation5], %s318
        %p320 = pneg %p90
        %p321 = pneg %p87
        %s322 = sand.u32 %s29, 1
        %s323 = scalar_lea.sflag [#allocation6], %s322
        %s324 = sand.u32 %s103, 1
        %s325 = smul.addr %s324, 8
        %s326 = scalar_lea.vmem [#allocation7], %s325
        %p327 = pneg %p116
        %p328 = pneg %p113
        %p329 = pneg %p144
        %p330 = pneg %p141
        %s331 = sand.u32 %s131, 1
        %s332 = scalar_lea.sflag [#allocation4], %s331
        %s333 = sand.u32 %s131, 1
        %s334 = smul.addr %s333, 8
        %s335 = scalar_lea.vmem [#allocation8], %s334
        %p336 = pneg %p172
        %p337 = pneg %p169
        %s338 = sand.u32 %s29, 1
        %s339 = scalar_lea.sflag [#allocation10], %s338
        %s340 = sand.u32 %s159, 1
        %s341 = smul.addr %s340, 8
        %s342 = scalar_lea.vmem [#allocation9], %s341
        %p343 = pneg %p200
        %p344 = pneg %p197
        %s345 = sand.u32 %s29, 1
        %s346 = scalar_lea.sflag [#allocation10], %s345
        %s347 = sand.u32 %s187, 1
        %s348 = smul.addr %s347, 8
        %s349 = scalar_lea.vmem [#allocation11], %s348
        %v350 = vld [vmem:[%s285] sm:$0xff]
        %v351 = vmul.f32 %v350, 0.17677669
        %v352 = vld [vmem:[%s294] sm:$0xff]
        %v353 = vld [vmem:[%s303] sm:$0xff]
        %vm354 = vcmask 261120
        %v356 = vsel %vm354, %v351, 0
        %v359 = vsel %vm354, %v352, 0
        %361 = vmatprep.subr.mxu0 0.0
        %362 = vmatpush1.xpose.msra.mxu0 0.0
        %363 = vmatprep.subr.mxu0 0.0
        %364 = vmatpush1.xpose.msra.mxu0 0.0
        %365 = vmatprep.subr.mxu0 0.0
        %366 = vmatpush1.xpose.msra.mxu0 0.0
        %367 = vmatprep.subr.mxu0 0.0
        %368 = vmatpush1.xpose.msra.mxu0 0.0
        %369 = vmatprep.subr.mxu0 0.0
        %370 = vmatpush1.xpose.msra.mxu0 0.0
        %371 = vmatprep.subr.mxu0 0.0
        %372 = vmatpush1.xpose.msra.mxu0 0.0
        %373 = vmatprep.subr.mxu0 0.0
        %374 = vmatpush1.xpose.msra.mxu0 0.0
        %375 = vmatprep.subr.mxu0 0.0
        %376 = vmatpush1.xpose.msra.mxu0 0.0
        %377 = vmatprep.subr.mxu0 0.0
        %378 = vmatpush1.xpose.msra.mxu0 0.0
        %379 = vmatprep.subr.mxu0 0.0
        %380 = vmatpush1.xpose.msra.mxu0 0.0
        %381 = vmatprep.subr.mxu0 0.0
        %382 = vmatpush1.xpose.msra.mxu0 0.0
        %383 = vmatprep.subr.mxu0 0.0
        %384 = vmatpush1.xpose.msra.mxu0 0.0
        %385 = vmatprep.subr.mxu0 0.0
        %386 = vmatpush1.xpose.msra.mxu0 0.0
        %387 = vmatprep.subr.mxu0 0.0
        %388 = vmatpush1.xpose.msra.mxu0 0.0
        %389 = vmatprep.subr.mxu0 0.0
        %390 = vmatpush1.xpose.msra.mxu0 0.0
        %391 = vmatprep.subr.mxu0 0.0
        %392 = vmatpush1.xpose.msra.mxu0 %v359
        %393 = vmatprep.subr.mxu0 0.0
        %394 = vmatpush2.xpose.msra.mxu0 0.0
        %395 = vmatprep.subr.mxu0 0.0
        %396 = vmatpush2.xpose.msra.mxu0 0.0
        %397 = vmatprep.subr.mxu0 0.0
        %398 = vmatpush2.xpose.msra.mxu0 0.0
        %399 = vmatprep.subr.mxu0 0.0
        %400 = vmatpush2.xpose.msra.mxu0 0.0
        %401 = vmatprep.subr.mxu0 0.0
        %402 = vmatpush2.xpose.msra.mxu0 0.0
        %403 = vmatprep.subr.mxu0 0.0
        %404 = vmatpush2.xpose.msra.mxu0 0.0
        %405 = vmatprep.subr.mxu0 0.0
        %406 = vmatpush2.xpose.msra.mxu0 0.0
        %407 = vmatprep.subr.mxu0 0.0
        %408 = vmatpush2.xpose.msra.mxu0 0.0
        %409 = vmatprep.subr.mxu0 0.0
        %410 = vmatpush2.xpose.msra.mxu0 0.0
        %411 = vmatprep.subr.mxu0 0.0
        %412 = vmatpush2.xpose.msra.mxu0 0.0
        %413 = vmatprep.subr.mxu0 0.0
        %414 = vmatpush2.xpose.msra.mxu0 0.0
        %415 = vmatprep.subr.mxu0 0.0
        %416 = vmatpush2.xpose.msra.mxu0 0.0
        %417 = vmatprep.subr.mxu0 0.0
        %418 = vmatpush2.xpose.msra.mxu0 0.0
        %419 = vmatprep.subr.mxu0 0.0
        %420 = vmatpush2.xpose.msra.mxu0 0.0
        %421 = vmatprep.subr.mxu0 0.0
        %422 = vmatpush2.xpose.msra.mxu0 0.0
        %423 = vmatprep.subr.mxu0 0.0
        %424 = vmatpush2.xpose.msra.mxu0 0.0
        %425 = vmatprep.mubr.f32.mxu0 0.0
        %426 = vmatmul.mubr.f32.gmra.mxu0 %v356
        %v427 = vpop.f32.mrf.mxu0
        %v428 = vadd.f32 0.0, %v427
        %v429 = vpop.f32.mrf.mxu0
        %430 = vdwg.mxu0
        %vm431 = vcmask 64512
        %v432 = vsel %vm431, %v428, -inf
        %433 = vmax.xlane.f32.xlu0 %v432
        %v434 = vpop.xlane.xlu0 %433
        %v435 = vsub.f32 %v428, %v434
        %v436 = vmul.f32 %v435, 1.442695
        %v437 = vpow.pop %v436
        %v438 = vsel %vm431, %v437, 0.0
        %439 = vadd.xlane.f32.xlu0 %v438
        %v440 = vpop.xlane.xlu0 %439
        %v441 = vrcp.pop %v440
        %v442 = vmul.f32 1.0, %v441
        %v443 = vmul.f32 %v437, %v442
        %v444 = vlog2.pop %v440
        %v445 = vmul.f32 %v444, 0.6931472
        %v446 = vsub.f32 %v435, %v445
        %v448 = vsel %vm431, %v443, 0
        %450 = vmatprep.subr.mxu0 0.0
        %451 = vmatpush1.msra.mxu0 0.0
        %452 = vmatprep.subr.mxu0 0.0
        %453 = vmatpush1.msra.mxu0 0.0
        %454 = vmatprep.subr.mxu0 0.0
        %455 = vmatpush1.msra.mxu0 0.0
        %456 = vmatprep.subr.mxu0 0.0
        %457 = vmatpush1.msra.mxu0 0.0
        %458 = vmatprep.subr.mxu0 0.0
        %459 = vmatpush1.msra.mxu0 0.0
        %460 = vmatprep.subr.mxu0 0.0
        %461 = vmatpush1.msra.mxu0 0.0
        %462 = vmatprep.subr.mxu0 0.0
        %463 = vmatpush1.msra.mxu0 0.0
        %464 = vmatprep.subr.mxu0 0.0
        %465 = vmatpush1.msra.mxu0 0.0
        %466 = vmatprep.subr.mxu0 0.0
        %467 = vmatpush1.msra.mxu0 0.0
        %468 = vmatprep.subr.mxu0 0.0
        %469 = vmatpush1.msra.mxu0 0.0
        %470 = vmatprep.subr.mxu0 0.0
        %471 = vmatpush1.msra.mxu0 0.0
        %472 = vmatprep.subr.mxu0 0.0
        %473 = vmatpush1.msra.mxu0 0.0
        %474 = vmatprep.subr.mxu0 0.0
        %475 = vmatpush1.msra.mxu0 0.0
        %476 = vmatprep.subr.mxu0 0.0
        %477 = vmatpush1.msra.mxu0 0.0
        %478 = vmatprep.subr.mxu0 0.0
        %479 = vmatpush1.msra.mxu0 0.0
        %480 = vmatprep.subr.mxu0 0.0
        %481 = vmatpush1.msra.mxu0 %v353
        %482 = vmatprep.subr.mxu0 0.0
        %483 = vmatpush2.msra.mxu0 0.0
        %484 = vmatprep.subr.mxu0 0.0
        %485 = vmatpush2.msra.mxu0 0.0
        %486 = vmatprep.subr.mxu0 0.0
        %487 = vmatpush2.msra.mxu0 0.0
        %488 = vmatprep.subr.mxu0 0.0
        %489 = vmatpush2.msra.mxu0 0.0
        %490 = vmatprep.subr.mxu0 0.0
        %491 = vmatpush2.msra.mxu0 0.0
        %492 = vmatprep.subr.mxu0 0.0
        %493 = vmatpush2.msra.mxu0 0.0
        %494 = vmatprep.subr.mxu0 0.0
        %495 = vmatpush2.msra.mxu0 0.0
        %496 = vmatprep.subr.mxu0 0.0
        %497 = vmatpush2.msra.mxu0 0.0
        %498 = vmatprep.subr.mxu0 0.0
        %499 = vmatpush2.msra.mxu0 0.0
        %500 = vmatprep.subr.mxu0 0.0
        %501 = vmatpush2.msra.mxu0 0.0
        %502 = vmatprep.subr.mxu0 0.0
        %503 = vmatpush2.msra.mxu0 0.0
        %504 = vmatprep.subr.mxu0 0.0
        %505 = vmatpush2.msra.mxu0 0.0
        %506 = vmatprep.subr.mxu0 0.0
        %507 = vmatpush2.msra.mxu0 0.0
        %508 = vmatprep.subr.mxu0 0.0
        %509 = vmatpush2.msra.mxu0 0.0
        %510 = vmatprep.subr.mxu0 0.0
        %511 = vmatpush2.msra.mxu0 0.0
        %512 = vmatprep.subr.mxu0 0.0
        %513 = vmatpush2.msra.mxu0 0.0
        %514 = vmatprep.mubr.f32.mxu0 0.0
        %515 = vmatmul.mubr.f32.gmra.mxu0 %v448
        %v516 = vpop.f32.mrf.mxu0
        %v517 = vadd.f32 0.0, %v516
        %v518 = vpop.f32.mrf.mxu0
        %519 = vdwg.mxu0
        %520 = vst.msk [vmem:[%s335] sm:$0xff] %vm354, %v517
        %521 = vst.msk [vmem:[%s342] sm:$0xff] %vm431, %v443
        %522 = vst.msk [vmem:[%s349] sm:$0xff] %vm431, %v446
        %s523 = sand.u32 %s131, 1
        %s524 = scalar_lea.sflag [#allocation4], %s523
        %s525 = sand.u32 %s131, 1
        %s526 = smul.addr %s525, 8
        %s527 = scalar_lea.vmem [#allocation8], %s526
        %s528 = sand.u32 %s29, 1
        %s529 = scalar_lea.sflag [#allocation10], %s528
        %s530 = sand.u32 %s159, 1
        %s531 = smul.addr %s530, 8
        %s532 = scalar_lea.vmem [#allocation9], %s531
        %s533 = sand.u32 %s29, 1
        %s534 = scalar_lea.sflag [#allocation10], %s533
        %s535 = sand.u32 %s187, 1
        %s536 = smul.addr %s535, 8
        %s537 = scalar_lea.vmem [#allocation11], %s536
        // Predicated region
        $region45: #{tpu_custom_call.1} parent=31 // pred_check
          %p538 = pneg %p141
        $region46: #{tpu_custom_call.1} parent=31 // pred_check_branch
          %540 = sbr.rel (%p538) target = $region48
        $region47: #{tpu_custom_call.1} parent=31 // pred_region
          %s542 = ssub.s32 128, 128
          %543 = vsyncadd %s524, %s542
          %s544 = sadd.s32 %s34, %s33
          %s545 = smul.addr %s544, 128
          %s546 = scalar_lea.hbm %s3, %s545
          %s548 = sshll.u32 %s527, 4
          %s549 = int_to_ptr.vmem [resolvable:$true] %s548
          %551 = dma.vmem_to_hbm [thread:$0]  %s549, 128, %s546, %s524
        $region48: #{tpu_custom_call.1} parent=31 // pred_fallthru
          _
        // Predicated region
        $region49: #{tpu_custom_call.1} parent=31 // pred_check
          %p552 = pneg %p169
        $region50: #{tpu_custom_call.1} parent=31 // pred_check_branch
          %554 = sbr.rel (%p552) target = $region52
        $region51: #{tpu_custom_call.1} parent=31 // pred_region
          %s556 = ssub.s32 128, 128
          %557 = vsyncadd %s529, %s556
          %s558 = sadd.s32 %s34, %s33
          %s559 = smul.addr %s558, 128
          %s560 = scalar_lea.hbm %s4, %s559
          %s562 = sshll.u32 %s532, 4
          %s563 = int_to_ptr.vmem [resolvable:$true] %s562
          %565 = dma.vmem_to_hbm [thread:$0]  %s563, 128, %s560, %s529
        $region52: #{tpu_custom_call.1} parent=31 // pred_fallthru
          _
        // Predicated region
        $region53: #{tpu_custom_call.1} parent=31 // pred_check
          %p566 = pneg %p197
        $region54: #{tpu_custom_call.1} parent=31 // pred_check_branch
          %568 = sbr.rel (%p566) target = $region56
        $region55: #{tpu_custom_call.1} parent=31 // pred_region
          %s570 = ssub.s32 128, 128
          %571 = vsyncadd %s534, %s570
          %s572 = sadd.s32 %s34, %s33
          %s573 = smul.addr %s572, 128
          %s574 = scalar_lea.hbm %s5, %s573
          %s576 = sshll.u32 %s537, 4
          %s577 = int_to_ptr.vmem [resolvable:$true] %s576
          %579 = dma.vmem_to_hbm [thread:$0]  %s577, 128, %s574, %s534
        $region56: #{tpu_custom_call.1} parent=31 // pred_fallthru
          _
      $region32: #{tpu_custom_call.1} parent=5 // pred_fallthru
        _
      %p580 = scmp.le.s32.totalorder 2, %s24
      // Predicated region
      $region57: #{tpu_custom_call.1} parent=5 // pred_check
        %p581 = pneg %p580
      $region58: #{tpu_custom_call.1} parent=5 // pred_check_branch
        %583 = sbr.rel (%p581) target = $region60
      $region59: #{tpu_custom_call.1} parent=5 // pred_region
        %s584 = ssub.s32 %s24, 2
        // Predicated region
        $region61: #{tpu_custom_call.1} parent=59 // pred_check
          %p585 = pneg %p147
        $region62: #{tpu_custom_call.1} parent=59 // pred_check_branch
          %587 = sbr.rel (%p585) target = $region64
        $region63: #{tpu_custom_call.1} parent=59 // pred_region
          %s588 = sand.u32 %s132, 1
          %s589 = scalar_lea.sflag [#allocation4], %s588
          %s590 = sand.u32 %s132, 1
          %s591 = smul.addr %s590, 8
          %s592 = scalar_lea.vmem [#allocation8], %s591
          %593 = dma.done %s589, 128
        $region64: #{tpu_custom_call.1} parent=59 // pred_fallthru
          _
        // Predicated region
        $region65: #{tpu_custom_call.1} parent=59 // pred_check
          %p594 = pneg %p175
        $region66: #{tpu_custom_call.1} parent=59 // pred_check_branch
          %596 = sbr.rel (%p594) target = $region68
        $region67: #{tpu_custom_call.1} parent=59 // pred_region
          %s597 = sand.u32 %s30, 1
          %s598 = scalar_lea.sflag [#allocation10], %s597
          %s599 = sand.u32 %s160, 1
          %s600 = smul.addr %s599, 8
          %s601 = scalar_lea.vmem [#allocation9], %s600
          %602 = dma.done %s598, 128
        $region68: #{tpu_custom_call.1} parent=59 // pred_fallthru
          _
        // Predicated region
        $region69: #{tpu_custom_call.1} parent=59 // pred_check
          %p603 = pneg %p203
        $region70: #{tpu_custom_call.1} parent=59 // pred_check_branch
          %605 = sbr.rel (%p603) target = $region72
        $region71: #{tpu_custom_call.1} parent=59 // pred_region
          %s606 = sand.u32 %s30, 1
          %s607 = scalar_lea.sflag [#allocation10], %s606
          %s608 = sand.u32 %s188, 1
          %s609 = smul.addr %s608, 8
          %s610 = scalar_lea.vmem [#allocation11], %s609
          %611 = dma.done %s607, 128
        $region72: #{tpu_custom_call.1} parent=59 // pred_fallthru
          _
      $region60: #{tpu_custom_call.1} parent=5 // pred_fallthru
        _
    $region6: #{tpu_custom_call.1} parent=1 // loop_footer
      %s28 = sadd.s32 1, %s24
    $region7: #{tpu_custom_call.1} parent=1 // loop_footer_branch
      %23 = sbr.rel target = $region3
    $region8: #{tpu_custom_call.1} parent=1 // loop_exit
      _
    %612 = vsyncpa [#allocation3], 1
    %s613 = scalar_lea.sflag [#allocation3], 1
    %614 = vsyncpa %s613, 1
    %615 = vsyncpa [#allocation6], 1
    %s616 = scalar_lea.sflag [#allocation6], 1
    %617 = vsyncpa %s616, 1
    %618 = vsyncpa [#allocation4], 1
    %s619 = scalar_lea.sflag [#allocation4], 1
    %620 = vsyncpa %s619, 1
    %621 = vsyncpa [#allocation10], 1
    %s622 = scalar_lea.sflag [#allocation10], 1
    %623 = vsyncpa %s622, 1

</llo_original>
